<compile_context>
chip_gen: v6e
topology: v6e:2x2x1
jax: 0.10.0
libtpu: 0.0.40
codegen_flags: <defaults>
</compile_context>

<pallas_src>
import jax
import jax.numpy as jnp
from jax.experimental import pallas as pl
from jax.experimental.pallas import tpu as pltpu


def value_head_kernel(x_ref, wc_ref, bn_t_ref, w1_ref, b1_ref, w2t_ref, b2_ref,
                      o_ref):
    # x_ref:    (TB, C, P)  VMEM (f32 or bf16)     P = H*W
    # wc_ref:   (C,)        SMEM f32   conv weight with BN scale folded in
    # bn_t_ref: (1,)        SMEM f32   folded BN shift
    # w1_ref:   (P, 256)    VMEM bf16
    # b1_ref:   (1, 256)    VMEM f32
    # w2t_ref:  (1, 256)    VMEM f32   fc2 weight, transposed
    # b2_ref:   (1,)        SMEM f32
    # o_ref:    (TB, 1)     VMEM f32
    C = x_ref.shape[1]

    # 1x1 conv (+ folded BN scale) as unrolled scalar FMAs over channels (VPU only).
    acc = x_ref[:, 0, :].astype(jnp.float32) * wc_ref[0]
    for c in range(1, C):
        acc = acc + x_ref[:, c, :].astype(jnp.float32) * wc_ref[c]

    # BN shift + ReLU.
    h = jnp.maximum(acc + bn_t_ref[0], 0.0)                      # (TB, P) f32

    # fc1: Linear(P, 256) on the MXU, bf16 operands, f32 accumulation, + ReLU.
    y1 = jnp.dot(h.astype(jnp.bfloat16), w1_ref[...],
                 preferred_element_type=jnp.float32) + b1_ref[...]
    y1 = jnp.maximum(y1, 0.0)                                    # (TB, 256) f32

    # fc2: Linear(256, 1) as a VPU multiply + lane reduce (keeps the MXU free), + Tanh.
    y2 = jnp.sum(y1 * w2t_ref[...], axis=-1, keepdims=True) + b2_ref[0]
    o_ref[...] = jnp.tanh(y2)                                    # (TB, 1)


def value_head_forward(x_nchw, params, *, tile_b=256):
    """x_nchw: (B, C, H, W). Returns (B, 1) float32.

    tile_b: batch tile. Suggested: 128 (v5e), 256 (v6e), 128-256 (v7x, re-check VMEM).
    """
    B, C, H, W = x_nchw.shape
    P = H * W
    hidden = params["w1"].shape[1]

    x = x_nchw.reshape(B, C, P)                     # pure view of NCHW

    tb = min(tile_b, B)
    n_tiles = pl.cdiv(B, tb)
    Bp = n_tiles * tb
    if Bp != B:                                     # pad batch to a tile multiple
        x = jnp.pad(x, ((0, Bp - B), (0, 0), (0, 0)))

    # Fold the BatchNorm scale into the conv weights; keep the shift as a scalar.
    wc = (params["w_conv"].reshape(C) * params["bn_s"][0]).astype(jnp.float32)
    bn_t = params["bn_t"].astype(jnp.float32)
    # bf16 matmul operands for fc1 (halves w1 HBM/VMEM bytes, ~2-4x MXU throughput).
    w1_bf16 = params["w1"].astype(jnp.bfloat16)
    b1 = params["b1"].astype(jnp.float32)
    w2t = params["w2"].reshape(1, hidden).astype(jnp.float32)
    b2 = params["b2"].reshape(1).astype(jnp.float32)

    smem = pl.BlockSpec(memory_space=pltpu.MemorySpace.SMEM)

    out = pl.pallas_call(
        value_head_kernel,
        out_shape=jax.ShapeDtypeStruct((Bp, 1), jnp.float32),
        grid=(n_tiles,),
        in_specs=[
            # x: batch-tiled -> automatic double-buffered HBM->VMEM pipeline.
            pl.BlockSpec((tb, C, P), lambda i: (i, 0, 0)),
            smem,                                            # folded conv weight (C,)
            smem,                                            # folded BN shift (1,)
            # Weights: constant block index -> fetched once, resident across tiles.
            pl.BlockSpec((P, hidden), lambda i: (0, 0)),     # w1 (bf16)
            pl.BlockSpec((1, hidden), lambda i: (0, 0)),     # b1
            pl.BlockSpec((1, hidden), lambda i: (0, 0)),     # w2^T
            smem,                                            # b2 (1,)
        ],
        out_specs=pl.BlockSpec((tb, 1), lambda i: (i, 0)),
        compiler_params=pltpu.CompilerParams(
            dimension_semantics=("parallel",),               # megacore on v7x
            vmem_limit_bytes=48 * 1024 * 1024,
        ),
    )(x, wc, bn_t, w1_bf16, b1, w2t, b2)

    return out[:B]


def make_params(key, C, H, W, hidden=256):
    P = H * W
    k0, k1, k2, k3, _ = jax.random.split(key, 5)
    eps = 1e-5
    # BatchNorm2d(1) defaults: gamma=1, beta=0, running_mean=0, running_var=1.
    gamma, beta, r_mean, r_var = 1.0, 0.0, 0.0, 1.0
    bn_s = gamma / jnp.sqrt(r_var + eps)
    bn_t = beta - r_mean * bn_s
    return {
        # Conv2d(C, 1, (1,1), bias=False) weight, stored as (1, C, 1).
        "w_conv": (0.2 * jax.random.normal(k0, (1, C, 1))).astype(jnp.float32),
        "bn_s": jnp.array([bn_s], dtype=jnp.float32),
        "bn_t": jnp.array([bn_t], dtype=jnp.float32),
        # Linear(P, hidden): weight stored transposed (in, out) for x @ W.
        "w1": (0.05 * jax.random.normal(k1, (P, hidden))).astype(jnp.float32),
        "b1": (0.05 * jax.random.normal(k2, (1, hidden))).astype(jnp.float32),
        # Linear(hidden, 1); bias initialized to zero (per nn.init.zeros_).
        "w2": (0.05 * jax.random.normal(k3, (hidden, 1))).astype(jnp.float32),
        "b2": jnp.zeros((1, 1), dtype=jnp.float32),
    }


def value_head_reference(x_nchw, params, *, matmul_dtype=jnp.float32):
    """Pure-JAX reference. matmul_dtype=bf16 mirrors the kernel's fc1 precision."""
    B, C, H, W = x_nchw.shape
    P = H * W
    x = x_nchw.reshape(B, C, P).astype(jnp.float32)
    wc = params["w_conv"].reshape(1, C, 1) * params["bn_s"][0]
    h = jnp.maximum(jnp.sum(x * wc, axis=1) + params["bn_t"][0], 0.0)    # (B, P)
    y1 = jnp.dot(h.astype(matmul_dtype), params["w1"].astype(matmul_dtype),
                 preferred_element_type=jnp.float32) + params["b1"]
    y1 = jnp.maximum(y1, 0.0)                                            # (B, 256)
    return jnp.tanh(y1 @ params["w2"] + params["b2"])                    # (B, 1)


if __name__ == "__main__":
    key = jax.random.PRNGKey(0)
    kx, kp, kx2 = jax.random.split(key, 3)

    # Small case matching the module's natural shapes: shape_in = (4, 16, 16), batch 2.
    B, C, H, W = 2, 4, 16, 16
    x = jax.random.normal(kx, (B, C, H, W), dtype=jnp.float32)
    params = make_params(kp, C, H, W)

    out = jax.block_until_ready(value_head_forward(x, params))
    assert out.shape == (B, 1)
    ref_bf16 = jax.block_until_ready(value_head_reference(x, params,
                                                          matmul_dtype=jnp.bfloat16))
    ref_f32 = jax.block_until_ready(value_head_reference(x, params))
    assert jnp.allclose(out, ref_bf16, atol=1e-4, rtol=1e-4), (out, ref_bf16)
    assert jnp.allclose(out, ref_f32, atol=2e-2, rtol=2e-2), (out, ref_f32)

    # Larger case exercising the batch grid, resident weights and padding (B=300, tb=128).
    B2 = 300
    x2 = jax.random.normal(kx2, (B2, C, H, W), dtype=jnp.float32)
    out2 = jax.block_until_ready(value_head_forward(x2, params, tile_b=128))
    assert out2.shape == (B2, 1)
    ref2 = jax.block_until_ready(value_head_reference(x2, params))
    assert jnp.allclose(out2, ref2, atol=2e-2, rtol=2e-2), (out2, ref2)

    print("KERNEL_OK")
</pallas_src>

<mosaic_0001>
module attributes {stable_mosaic.version = 11 : i64} {
  func.func @value_head_kernel(%arg0: i32, %arg1: memref<2x4x256xf32, #tpu.memory_space<vmem>>, %arg2: memref<4xf32, #tpu.memory_space<smem>>, %arg3: memref<1xf32, #tpu.memory_space<smem>>, %arg4: memref<256x256xbf16, #tpu.memory_space<vmem>>, %arg5: memref<1x256xf32, #tpu.memory_space<vmem>>, %arg6: memref<1x256xf32, #tpu.memory_space<vmem>>, %arg7: memref<1xf32, #tpu.memory_space<smem>>, %arg8: memref<2x1xf32, #tpu.memory_space<vmem>>) attributes {dimension_semantics = [#tpu.dimension_semantics<parallel>], iteration_bounds = array<i64: 1>, scalar_prefetch = 0 : i64, scratch_operands = 0 : i64, tpu.core_type = #tpu.core_type<tc>, window_params = [{transform_indices = @transform_0, window_bounds = array<i64: 2, 4, 256>}, {transform_indices = @transform_1, window_bounds = array<i64: 4>}, {transform_indices = @transform_2, window_bounds = array<i64: 1>}, {pipeline_mode = #tpu.pipeline_mode<synchronous>, transform_indices = @transform_3, window_bounds = array<i64: 256, 256>}, {pipeline_mode = #tpu.pipeline_mode<synchronous>, transform_indices = @transform_4, window_bounds = array<i64: 1, 256>}, {pipeline_mode = #tpu.pipeline_mode<synchronous>, transform_indices = @transform_5, window_bounds = array<i64: 1, 256>}, {transform_indices = @transform_6, window_bounds = array<i64: 1>}, {transform_indices = @transform_7, window_bounds = array<i64: 2, 1>}]} {
    %c0 = arith.constant 0 : index
    %c0_0 = arith.constant 0 : index
    %c0_1 = arith.constant 0 : index
    %0 = vector.load %arg1[%c0, %c0_0, %c0_1] : memref<2x4x256xf32, #tpu.memory_space<vmem>>, vector<2x1x256xf32>
    %1 = vector.shape_cast %0 : vector<2x1x256xf32> to vector<2x256xf32>
    %c0_2 = arith.constant 0 : index
    %2 = memref.load %arg2[%c0_2] : memref<4xf32, #tpu.memory_space<smem>>
    %3 = vector.broadcast %2 : f32 to vector<2x256xf32>
    %4 = arith.mulf %1, %3 : vector<2x256xf32>
    %c0_3 = arith.constant 0 : index
    %c1 = arith.constant 1 : index
    %c0_4 = arith.constant 0 : index
    %5 = vector.load %arg1[%c0_3, %c1, %c0_4] : memref<2x4x256xf32, #tpu.memory_space<vmem>>, vector<2x1x256xf32>
    %6 = vector.shape_cast %5 : vector<2x1x256xf32> to vector<2x256xf32>
    %c1_5 = arith.constant 1 : index
    %7 = memref.load %arg2[%c1_5] : memref<4xf32, #tpu.memory_space<smem>>
    %8 = vector.broadcast %7 : f32 to vector<2x256xf32>
    %9 = arith.mulf %6, %8 : vector<2x256xf32>
    %10 = arith.addf %4, %9 : vector<2x256xf32>
    %c0_6 = arith.constant 0 : index
    %c2 = arith.constant 2 : index
    %c0_7 = arith.constant 0 : index
    %11 = vector.load %arg1[%c0_6, %c2, %c0_7] : memref<2x4x256xf32, #tpu.memory_space<vmem>>, vector<2x1x256xf32>
    %12 = vector.shape_cast %11 : vector<2x1x256xf32> to vector<2x256xf32>
    %c2_8 = arith.constant 2 : index
    %13 = memref.load %arg2[%c2_8] : memref<4xf32, #tpu.memory_space<smem>>
    %14 = vector.broadcast %13 : f32 to vector<2x256xf32>
    %15 = arith.mulf %12, %14 : vector<2x256xf32>
    %16 = arith.addf %10, %15 : vector<2x256xf32>
    %c0_9 = arith.constant 0 : index
    %c3 = arith.constant 3 : index
    %c0_10 = arith.constant 0 : index
    %17 = vector.load %arg1[%c0_9, %c3, %c0_10] : memref<2x4x256xf32, #tpu.memory_space<vmem>>, vector<2x1x256xf32>
    %18 = vector.shape_cast %17 : vector<2x1x256xf32> to vector<2x256xf32>
    %c3_11 = arith.constant 3 : index
    %19 = memref.load %arg2[%c3_11] : memref<4xf32, #tpu.memory_space<smem>>
    %20 = vector.broadcast %19 : f32 to vector<2x256xf32>
    %21 = arith.mulf %18, %20 : vector<2x256xf32>
    %22 = arith.addf %16, %21 : vector<2x256xf32>
    %c0_12 = arith.constant 0 : index
    %23 = memref.load %arg3[%c0_12] : memref<1xf32, #tpu.memory_space<smem>>
    %24 = vector.broadcast %23 : f32 to vector<2x256xf32>
    %25 = arith.addf %22, %24 : vector<2x256xf32>
    %cst = arith.constant 0.000000e+00 : f32
    %26 = vector.broadcast %cst : f32 to vector<2x256xf32>
    %27 = arith.maximumf %25, %26 : vector<2x256xf32>
    %28 = arith.truncf %27 : vector<2x256xf32> to vector<2x256xbf16>
    %c0_13 = arith.constant 0 : index
    %c0_14 = arith.constant 0 : index
    %29 = vector.load %arg4[%c0_13, %c0_14] : memref<256x256xbf16, #tpu.memory_space<vmem>>, vector<256x256xbf16>
    %cst_15 = arith.constant dense<0.000000e+00> : vector<2x256xf32>
    %30 = tpu.matmul %28, %29, %cst_15 {dimension_numbers = #tpu.dot_dimension_numbers<[1], [0], [0], [1], [0, 0, 1, 1], [], []>} : vector<2x256xbf16>, vector<256x256xbf16>, vector<2x256xf32> -> vector<2x256xf32>
    %c0_16 = arith.constant 0 : index
    %c0_17 = arith.constant 0 : index
    %31 = vector.load %arg5[%c0_16, %c0_17] : memref<1x256xf32, #tpu.memory_space<vmem>>, vector<1x256xf32>
    %32 = vector.broadcast %31 : vector<1x256xf32> to vector<2x256xf32>
    %33 = arith.addf %30, %32 : vector<2x256xf32>
    %cst_18 = arith.constant 0.000000e+00 : f32
    %34 = vector.broadcast %cst_18 : f32 to vector<2x256xf32>
    %35 = arith.maximumf %33, %34 : vector<2x256xf32>
    %c0_19 = arith.constant 0 : index
    %c0_20 = arith.constant 0 : index
    %36 = vector.load %arg6[%c0_19, %c0_20] : memref<1x256xf32, #tpu.memory_space<vmem>>, vector<1x256xf32>
    %37 = vector.broadcast %36 : vector<1x256xf32> to vector<2x256xf32>
    %38 = arith.mulf %35, %37 : vector<2x256xf32>
    %cst_21 = arith.constant dense<0.000000e+00> : vector<2xf32>
    %39 = vector.multi_reduction <add>, %38, %cst_21 [1] : vector<2x256xf32> to vector<2xf32>
    %40 = vector.shape_cast %39 : vector<2xf32> to vector<2x1xf32>
    %c0_22 = arith.constant 0 : index
    %41 = memref.load %arg7[%c0_22] : memref<1xf32, #tpu.memory_space<smem>>
    %42 = vector.broadcast %41 : f32 to vector<2x1xf32>
    %43 = arith.addf %40, %42 : vector<2x1xf32>
    %44 = math.tanh %43 : vector<2x1xf32>
    %c0_23 = arith.constant 0 : index
    %c0_24 = arith.constant 0 : index
    %45 = vector.load %arg8[%c0_23, %c0_24] : memref<2x1xf32, #tpu.memory_space<vmem>>, vector<2x1xf32>
    tpu.vector_store %arg8[%c0_23, %c0_24], %44 {strides = array<i32>} : memref<2x1xf32, #tpu.memory_space<vmem>>, vector<2x1xf32>,
    return
  }
  func.func @transform_0(%arg0: i32) -> (i32, i32, i32) {
    %c0_i32 = arith.constant 0 : i32
    %c0_i32_0 = arith.constant 0 : i32
    %c0_i32_1 = arith.constant 0 : i32
    return %arg0, %c0_i32, %c0_i32_0 : i32, i32, i32
  }
  func.func @transform_1(%arg0: i32) -> i32 {
    %c0_i32 = arith.constant 0 : i32
    %c0_i32_0 = arith.constant 0 : i32
    return %c0_i32 : i32
  }
  func.func @transform_2(%arg0: i32) -> i32 {
    %c0_i32 = arith.constant 0 : i32
    %c0_i32_0 = arith.constant 0 : i32
    return %c0_i32 : i32
  }
  func.func @transform_3(%arg0: i32) -> (i32, i32) {
    %c0_i32 = arith.constant 0 : i32
    %c0_i32_0 = arith.constant 0 : i32
    %c0_i32_1 = arith.constant 0 : i32
    return %c0_i32, %c0_i32_0 : i32, i32
  }
  func.func @transform_4(%arg0: i32) -> (i32, i32) {
    %c0_i32 = arith.constant 0 : i32
    %c0_i32_0 = arith.constant 0 : i32
    %c0_i32_1 = arith.constant 0 : i32
    return %c0_i32, %c0_i32_0 : i32, i32
  }
  func.func @transform_5(%arg0: i32) -> (i32, i32) {
    %c0_i32 = arith.constant 0 : i32
    %c0_i32_0 = arith.constant 0 : i32
    %c0_i32_1 = arith.constant 0 : i32
    return %c0_i32, %c0_i32_0 : i32, i32
  }
  func.func @transform_6(%arg0: i32) -> i32 {
    %c0_i32 = arith.constant 0 : i32
    %c0_i32_0 = arith.constant 0 : i32
    return %c0_i32 : i32
  }
  func.func @transform_7(%arg0: i32) -> (i32, i32) {
    %c0_i32 = arith.constant 0 : i32
    %c0_i32_0 = arith.constant 0 : i32
    return %arg0, %c0_i32 : i32, i32
  }
}

</mosaic_0001>

<llo_original>
// kernel: tpu_custom_call.1
$region0: #{tpu_custom_call.1}
  #allocation0 [shape = 'u32[]', space=smem, size = 0x4, offset = 0x4, fixed_abs, tag = 'smem constant byte address 0x4 - core index']
  #allocation1 [shape = 'u32[144,128]{1,0:T(1,128)}', space=vmem, size = 0x12000, scoped, tag = 'internal scratch']
  #allocation2 [shape = 'f32[1]{0:T(128)S(6)}', space=smem, size = 0x200, scoped, tag = 'scoped memory for tpu_custom_call.1']
  #allocation3 [shape = 'f32[1]{0:T(128)S(6)}', space=smem, size = 0x200, scoped, tag = 'scoped memory for tpu_custom_call.1']
  %s0 = inlined_call_operand.hbm [shape: f32[2,4,256], index: 0, kind: input, shape index: {}]
  %s1 = inlined_call_operand.vmem [shape: f32[4], index: 1, kind: input, shape index: {}]
  %s2 = inlined_call_operand.<no memory space> [shape: f32[1], index: 2, kind: input, shape index: {}]
  %s3 = inlined_call_operand.hbm [shape: bf16[256,256], index: 3, kind: input, shape index: {}]
  %s4 = inlined_call_operand.vmem [shape: f32[1,256], index: 4, kind: input, shape index: {}]
  %s5 = inlined_call_operand.vmem [shape: f32[1,256], index: 5, kind: input, shape index: {}]
  %s6 = inlined_call_operand.<no memory space> [shape: f32[1], index: 6, kind: input, shape index: {}]
  %s7 = inlined_call_operand.vmem [shape: f32[2,1], index: 7, kind: output, shape index: {}]
  %s8 = sld [smem:[#allocation0]]
  $region50: #{tpu_custom_call.1} parent=0
    _
  %s10 = ssub.s32 1, %s8
  %s11 = scalar_select 0, %s10, %s8
  %12 = sst [smem:[#allocation2]] %s2
  %13 = sst [smem:[#allocation3]] %s6
  $region1: #{tpu_custom_call.1} parent=0
    #allocation4 [shape = 'u8[8192]{0}', space=vmem, size = 0x2000, scoped, tag = 'input window, operand 0, single buffered']
    #allocation5 [shape = 's32[1]{0}', space=sflag, size = 0x4, scoped, tag = 'scoped memory for tpu_custom_call.1']
    #allocation6 [shape = 's32[1]{0}', space=sflag, size = 0x4, scoped, tag = 'scoped memory for tpu_custom_call.1']
    #allocation7 [shape = 'u8[512]{0}', space=smem, size = 0x200, scoped, tag = 'input window, operand 1, single buffered']
    #allocation8 [shape = 'u8[131072]{0}', space=vmem, size = 0x20000, scoped, tag = 'input window, operand 3, single buffered']
    #allocation9 [shape = 's32[1]{0}', space=sflag, size = 0x4, scoped, tag = 'scoped memory for tpu_custom_call.1']
    %14 = vsyncpa [#allocation5], 0
    %15 = vsyncpa [#allocation6], 0
    %16 = vsyncpa [#allocation9], 0
    // Predicated region
    $region2: #{tpu_custom_call.1} parent=1 // pred_check
      _
    $region3: #{tpu_custom_call.1} parent=1 // pred_check_branch
      %18 = sbr.rel (0) target = $region5
    $region4: #{tpu_custom_call.1} parent=1 // pred_region
      %s20 = ssub.s32 256, 256
      %21 = vsyncadd [#allocation5], %s20
      %s22 = sshll.u32 [#allocation4], 4
      %s23 = int_to_ptr.vmem [resolvable:$true] %s22
      %28 = dma.hbm_to_vmem [thread:$0]  %s0, 256, %s23, [#allocation5], 128, 128, 8
    $region5: #{tpu_custom_call.1} parent=1 // pred_fallthru
      _
    // Predicated region
    $region6: #{tpu_custom_call.1} parent=1 // pred_check
      _
    $region7: #{tpu_custom_call.1} parent=1 // pred_check_branch
      %30 = sbr.rel (0) target = $region9
    $region8: #{tpu_custom_call.1} parent=1 // pred_region
      %s32 = ssub.s32 16, 16
      %33 = vsyncadd [#allocation6], %s32
      %s35 = sshll.u32 %s1, 4
      %s36 = int_to_ptr.vmem [resolvable:$true] %s35
      %38 = dma.vmem_to_smem %s36, 16, [#allocation7], [#allocation6]
    $region9: #{tpu_custom_call.1} parent=1 // pred_fallthru
      _
    // Predicated region
    $region10: #{tpu_custom_call.1} parent=1 // pred_check
      _
    $region11: #{tpu_custom_call.1} parent=1 // pred_check_branch
      %40 = sbr.rel (0) target = $region13
    $region12: #{tpu_custom_call.1} parent=1 // pred_region
      _
    $region13: #{tpu_custom_call.1} parent=1 // pred_fallthru
      _
    // Predicated region
    $region14: #{tpu_custom_call.1} parent=1 // pred_check
      _
    $region15: #{tpu_custom_call.1} parent=1 // pred_check_branch
      %42 = sbr.rel (0) target = $region17
    $region16: #{tpu_custom_call.1} parent=1 // pred_region
      %s44 = ssub.s32 4096, 4096
      %45 = vsyncadd [#allocation9], %s44
      %s46 = sshll.u32 [#allocation8], 4
      %s47 = int_to_ptr.vmem [resolvable:$true] %s46
      %52 = dma.hbm_to_vmem [thread:$0]  %s3, 4096, %s47, [#allocation9], 128, 128, 8
    $region17: #{tpu_custom_call.1} parent=1 // pred_fallthru
      _
    // Predicated region
    $region18: #{tpu_custom_call.1} parent=1 // pred_check
      _
    $region19: #{tpu_custom_call.1} parent=1 // pred_check_branch
      %54 = sbr.rel (0) target = $region21
    $region20: #{tpu_custom_call.1} parent=1 // pred_region
      _
    $region21: #{tpu_custom_call.1} parent=1 // pred_fallthru
      _
    // Predicated region
    $region22: #{tpu_custom_call.1} parent=1 // pred_check
      _
    $region23: #{tpu_custom_call.1} parent=1 // pred_check_branch
      %56 = sbr.rel (0) target = $region25
    $region24: #{tpu_custom_call.1} parent=1 // pred_region
      _
    $region25: #{tpu_custom_call.1} parent=1 // pred_fallthru
      _
    // Predicated region
    $region26: #{tpu_custom_call.1} parent=1 // pred_check
      _
    $region27: #{tpu_custom_call.1} parent=1 // pred_check_branch
      %58 = sbr.rel (0) target = $region29
    $region28: #{tpu_custom_call.1} parent=1 // pred_region
      _
    $region29: #{tpu_custom_call.1} parent=1 // pred_fallthru
      _
    // Predicated region
    $region30: #{tpu_custom_call.1} parent=1 // pred_check
      _
    $region31: #{tpu_custom_call.1} parent=1 // pred_check_branch
      %60 = sbr.rel (0) target = $region33
    $region32: #{tpu_custom_call.1} parent=1 // pred_region
      %61 = dma.done [#allocation5], 256
    $region33: #{tpu_custom_call.1} parent=1 // pred_fallthru
      _
    // Predicated region
    $region34: #{tpu_custom_call.1} parent=1 // pred_check
      _
    $region35: #{tpu_custom_call.1} parent=1 // pred_check_branch
      %63 = sbr.rel (0) target = $region37
    $region36: #{tpu_custom_call.1} parent=1 // pred_region
      %64 = dma.done [#allocation6], 16
    $region37: #{tpu_custom_call.1} parent=1 // pred_fallthru
      _
    // Predicated region
    $region38: #{tpu_custom_call.1} parent=1 // pred_check
      _
    $region39: #{tpu_custom_call.1} parent=1 // pred_check_branch
      %66 = sbr.rel (0) target = $region41
    $region40: #{tpu_custom_call.1} parent=1 // pred_region
      %67 = dma.done [#allocation9], 4096
    $region41: #{tpu_custom_call.1} parent=1 // pred_fallthru
      _
    %68 = sfence
    %v69 = vld [vmem:[#allocation4] ss:$4 sm:$0x3]
    %s70 = scalar_lea.vmem [#allocation4], 8
    %v71 = vld [vmem:[%s70] ss:$4 sm:$0x3]
    %s72 = sld [smem:[#allocation7]]
    %v73 = vstv %s72
    %v74 = vmul.f32 %v69, %v73
    %v75 = vmul.f32 %v71, %v73
    %s76 = scalar_lea.vmem [#allocation4], 1
    %v77 = vld [vmem:[%s76] ss:$4 sm:$0x3]
    %s78 = scalar_lea.vmem [#allocation4], 9
    %v79 = vld [vmem:[%s78] ss:$4 sm:$0x3]
    %s80 = sld [smem:[#allocation7 + $0x1]]
    %v81 = vstv %s80
    %v82 = vmul.f32 %v77, %v81
    %v83 = vmul.f32 %v79, %v81
    %v84 = vadd.f32 %v74, %v82
    %v85 = vadd.f32 %v75, %v83
    %s86 = scalar_lea.vmem [#allocation4], 2
    %v87 = vld [vmem:[%s86] ss:$4 sm:$0x3]
    %s88 = scalar_lea.vmem [#allocation4], 10
    %v89 = vld [vmem:[%s88] ss:$4 sm:$0x3]
    %s90 = sld [smem:[#allocation7 + $0x2]]
    %v91 = vstv %s90
    %v92 = vmul.f32 %v87, %v91
    %v93 = vmul.f32 %v89, %v91
    %v94 = vadd.f32 %v84, %v92
    %v95 = vadd.f32 %v85, %v93
    %s96 = scalar_lea.vmem [#allocation4], 3
    %v97 = vld [vmem:[%s96] ss:$4 sm:$0x3]
    %s98 = scalar_lea.vmem [#allocation4], 11
    %v99 = vld [vmem:[%s98] ss:$4 sm:$0x3]
    %s100 = sld [smem:[#allocation7 + $0x3]]
    %v101 = vstv %s100
    %v102 = vmul.f32 %v97, %v101
    %v103 = vmul.f32 %v99, %v101
    %v104 = vadd.f32 %v94, %v102
    %v105 = vadd.f32 %v95, %v103
    %s106 = sld [smem:[#allocation2]]
    %v107 = vstv %s106
    %v108 = vadd.f32 %v104, %v107
    %v109 = vadd.f32 %v105, %v107
    %v110 = vmax.f32 %v108, 0.0
    %v111 = vmax.f32 %v109, 0.0
    %v114 = vlaneseq
    %v115 = vshrl.u32 %v114, 7
    %v116 = vsub.s32 0, %v115
    %v117 = vrot.slane %v110, %v116
    %v118 = vlaneseq
    %v119 = vshrl.u32 %v118, 7
    %v120 = vsub.s32 1, %v119
    %v121 = vrot.slane %v110, %v120
    %v122 = vlaneseq
    %v123 = vshrl.u32 %v122, 7
    %v124 = vsub.s32 0, %v123
    %v125 = vrot.slane %v111, %v124
    %v126 = vlaneseq
    %v127 = vshrl.u32 %v126, 7
    %v128 = vsub.s32 1, %v127
    %v129 = vrot.slane %v111, %v128
    %v134 = vpack.c.bf16 %v117, %v117
    %v135 = vpack.c.bf16 %v121, %v121
    %v136 = vpack.c.bf16 %v125, %v125
    %v137 = vpack.c.bf16 %v129, %v129
    %v138 = vld [vmem:[#allocation8] sm:$0xff]
    %v139 = vld [vmem:[#allocation8 + $0x8] sm:$0xff]
    %v140 = vld [vmem:[#allocation8 + $0x10] sm:$0xff]
    %v141 = vld [vmem:[#allocation8 + $0x18] sm:$0xff]
    %v142 = vld [vmem:[#allocation8 + $0x20] sm:$0xff]
    %v143 = vld [vmem:[#allocation8 + $0x28] sm:$0xff]
    %v144 = vld [vmem:[#allocation8 + $0x30] sm:$0xff]
    %v145 = vld [vmem:[#allocation8 + $0x38] sm:$0xff]
    %v146 = vld [vmem:[#allocation8 + $0x40] sm:$0xff]
    %v147 = vld [vmem:[#allocation8 + $0x48] sm:$0xff]
    %v148 = vld [vmem:[#allocation8 + $0x50] sm:$0xff]
    %v149 = vld [vmem:[#allocation8 + $0x58] sm:$0xff]
    %v150 = vld [vmem:[#allocation8 + $0x60] sm:$0xff]
    %v151 = vld [vmem:[#allocation8 + $0x68] sm:$0xff]
    %v152 = vld [vmem:[#allocation8 + $0x70] sm:$0xff]
    %v153 = vld [vmem:[#allocation8 + $0x78] sm:$0xff]
    %v154 = vld [vmem:[#allocation8 + $0x80] sm:$0xff]
    %v155 = vld [vmem:[#allocation8 + $0x88] sm:$0xff]
    %v156 = vld [vmem:[#allocation8 + $0x90] sm:$0xff]
    %v157 = vld [vmem:[#allocation8 + $0x98] sm:$0xff]
    %v158 = vld [vmem:[#allocation8 + $0xa0] sm:$0xff]
    %v159 = vld [vmem:[#allocation8 + $0xa8] sm:$0xff]
    %v160 = vld [vmem:[#allocation8 + $0xb0] sm:$0xff]
    %v161 = vld [vmem:[#allocation8 + $0xb8] sm:$0xff]
    %v162 = vld [vmem:[#allocation8 + $0xc0] sm:$0xff]
    %v163 = vld [vmem:[#allocation8 + $0xc8] sm:$0xff]
    %v164 = vld [vmem:[#allocation8 + $0xd0] sm:$0xff]
    %v165 = vld [vmem:[#allocation8 + $0xd8] sm:$0xff]
    %v166 = vld [vmem:[#allocation8 + $0xe0] sm:$0xff]
    %v167 = vld [vmem:[#allocation8 + $0xe8] sm:$0xff]
    %v168 = vld [vmem:[#allocation8 + $0xf0] sm:$0xff]
    %v169 = vld [vmem:[#allocation8 + $0xf8] sm:$0xff]
    %v170 = vld [vmem:[%s4] sm:$0x3]
    %v172 = vlaneseq
    %v173 = vshrl.u32 %v172, 7
    %v174 = vsub.s32 0, %v173
    %v175 = vrot.slane %v170, %v174
    %v176 = vlaneseq
    %v177 = vshrl.u32 %v176, 7
    %v178 = vsub.s32 1, %v177
    %v179 = vrot.slane %v170, %v178
    %v186 = vunpack.c.l.b16 %v134
    %v187 = vunpack.c.l.b16 %v135
    %v188 = vunpack.c.l.b16 %v136
    %v189 = vunpack.c.l.b16 %v137
    %v190 = vrot.slane %v188, 7
    %vm191 = vcmask 1041409
    %v192 = vsel %vm191, %v190, %v186
    %v193 = vrot.slane %v189, 7
    %v194 = vsel %vm191, %v193, %v187
    %v195 = vpack.c.b16 %v192, %v192
    %v196 = vpack.c.b16 %v194, %v194
    %v231 = vunpack.c.l.b16 %v138
    %v232 = vunpack.c.h.b16 %v138
    %v233 = vunpack.c.l.b16 %v139
    %v234 = vunpack.c.h.b16 %v139
    %v235 = vunpack.c.l.b16 %v140
    %v236 = vunpack.c.h.b16 %v140
    %v237 = vunpack.c.l.b16 %v141
    %v238 = vunpack.c.h.b16 %v141
    %v239 = vunpack.c.l.b16 %v142
    %v240 = vunpack.c.h.b16 %v142
    %v241 = vunpack.c.l.b16 %v143
    %v242 = vunpack.c.h.b16 %v143
    %v243 = vunpack.c.l.b16 %v144
    %v244 = vunpack.c.h.b16 %v144
    %v245 = vunpack.c.l.b16 %v145
    %v246 = vunpack.c.h.b16 %v145
    %v247 = vunpack.c.l.b16 %v146
    %v248 = vunpack.c.h.b16 %v146
    %v249 = vunpack.c.l.b16 %v147
    %v250 = vunpack.c.h.b16 %v147
    %v251 = vunpack.c.l.b16 %v148
    %v252 = vunpack.c.h.b16 %v148
    %v253 = vunpack.c.l.b16 %v149
    %v254 = vunpack.c.h.b16 %v149
    %v255 = vunpack.c.l.b16 %v150
    %v256 = vunpack.c.h.b16 %v150
    %v257 = vunpack.c.l.b16 %v151
    %v258 = vunpack.c.h.b16 %v151
    %v259 = vunpack.c.l.b16 %v152
    %v260 = vunpack.c.h.b16 %v152
    %v261 = vunpack.c.l.b16 %v153
    %v262 = vunpack.c.h.b16 %v153
    %v263 = vunpack.c.l.b16 %v154
    %v264 = vunpack.c.h.b16 %v154
    %v265 = vunpack.c.l.b16 %v155
    %v266 = vunpack.c.h.b16 %v155
    %v267 = vunpack.c.l.b16 %v156
    %v268 = vunpack.c.h.b16 %v156
    %v269 = vunpack.c.l.b16 %v157
    %v270 = vunpack.c.h.b16 %v157
    %v271 = vunpack.c.l.b16 %v158
    %v272 = vunpack.c.h.b16 %v158
    %v273 = vunpack.c.l.b16 %v159
    %v274 = vunpack.c.h.b16 %v159
    %v275 = vunpack.c.l.b16 %v160
    %v276 = vunpack.c.h.b16 %v160
    %v277 = vunpack.c.l.b16 %v161
    %v278 = vunpack.c.h.b16 %v161
    %v279 = vunpack.c.l.b16 %v162
    %v280 = vunpack.c.h.b16 %v162
    %v281 = vunpack.c.l.b16 %v163
    %v282 = vunpack.c.h.b16 %v163
    %v283 = vunpack.c.l.b16 %v164
    %v284 = vunpack.c.h.b16 %v164
    %v285 = vunpack.c.l.b16 %v165
    %v286 = vunpack.c.h.b16 %v165
    %v287 = vunpack.c.l.b16 %v166
    %v288 = vunpack.c.h.b16 %v166
    %v289 = vunpack.c.l.b16 %v167
    %v290 = vunpack.c.h.b16 %v167
    %v291 = vunpack.c.l.b16 %v168
    %v292 = vunpack.c.h.b16 %v168
    %v293 = vunpack.c.l.b16 %v169
    %v294 = vunpack.c.h.b16 %v169
    %v295 = vpack.c.b16 %v233, %v231
    %v296 = vpack.c.b16 %v234, %v232
    %v297 = vpack.c.b16 %v237, %v235
    %v298 = vpack.c.b16 %v238, %v236
    %v299 = vpack.c.b16 %v241, %v239
    %v300 = vpack.c.b16 %v242, %v240
    %v301 = vpack.c.b16 %v245, %v243
    %v302 = vpack.c.b16 %v246, %v244
    %v303 = vpack.c.b16 %v249, %v247
    %v304 = vpack.c.b16 %v250, %v248
    %v305 = vpack.c.b16 %v253, %v251
    %v306 = vpack.c.b16 %v254, %v252
    %v307 = vpack.c.b16 %v257, %v255
    %v308 = vpack.c.b16 %v258, %v256
    %v309 = vpack.c.b16 %v261, %v259
    %v310 = vpack.c.b16 %v262, %v260
    %v311 = vpack.c.b16 %v265, %v263
    %v312 = vpack.c.b16 %v266, %v264
    %v313 = vpack.c.b16 %v269, %v267
    %v314 = vpack.c.b16 %v270, %v268
    %v315 = vpack.c.b16 %v273, %v271
    %v316 = vpack.c.b16 %v274, %v272
    %v317 = vpack.c.b16 %v277, %v275
    %v318 = vpack.c.b16 %v278, %v276
    %v319 = vpack.c.b16 %v281, %v279
    %v320 = vpack.c.b16 %v282, %v280
    %v321 = vpack.c.b16 %v285, %v283
    %v322 = vpack.c.b16 %v286, %v284
    %v323 = vpack.c.b16 %v289, %v287
    %v324 = vpack.c.b16 %v290, %v288
    %v325 = vpack.c.b16 %v293, %v291
    %v326 = vpack.c.b16 %v294, %v292
    %359 = vmatprep.subr.bf16.mxu0 %v310
    %360 = vmatpush1.bf16.msra.mxu0 %v309
    %361 = vmatprep.subr.bf16.mxu0 %v308
    %362 = vmatpush1.bf16.msra.mxu0 %v307
    %363 = vmatprep.subr.bf16.mxu0 %v306
    %364 = vmatpush1.bf16.msra.mxu0 %v305
    %365 = vmatprep.subr.bf16.mxu0 %v304
    %366 = vmatpush1.bf16.msra.mxu0 %v303
    %367 = vmatprep.subr.bf16.mxu0 %v302
    %368 = vmatpush1.bf16.msra.mxu0 %v301
    %369 = vmatprep.subr.bf16.mxu0 %v300
    %370 = vmatpush1.bf16.msra.mxu0 %v299
    %371 = vmatprep.subr.bf16.mxu0 %v298
    %372 = vmatpush1.bf16.msra.mxu0 %v297
    %373 = vmatprep.subr.bf16.mxu0 %v296
    %374 = vmatpush1.bf16.msra.mxu0 %v295
    %375 = vmatprep.subr.bf16.mxu0 %v326
    %376 = vmatpush2.bf16.msra.mxu0 %v325
    %377 = vmatprep.subr.bf16.mxu0 %v324
    %378 = vmatpush2.bf16.msra.mxu0 %v323
    %379 = vmatprep.subr.bf16.mxu0 %v322
    %380 = vmatpush2.bf16.msra.mxu0 %v321
    %381 = vmatprep.subr.bf16.mxu0 %v320
    %382 = vmatpush2.bf16.msra.mxu0 %v319
    %383 = vmatprep.subr.bf16.mxu0 %v318
    %384 = vmatpush2.bf16.msra.mxu0 %v317
    %385 = vmatprep.subr.bf16.mxu0 %v316
    %386 = vmatpush2.bf16.msra.mxu0 %v315
    %387 = vmatprep.subr.bf16.mxu0 %v314
    %388 = vmatpush2.bf16.msra.mxu0 %v313
    %389 = vmatprep.subr.bf16.mxu0 %v312
    %390 = vmatpush2.bf16.msra.mxu0 %v311
    %391 = vmatprep.mubr.bf16.mxu0 %v196
    %392 = vmatmul.mubr.bf16.gmra.mxu0 %v195
    %v393 = vpop.f32.mrf.mxu0
    %v394 = vadd.f32 %v175, %v393
    %v395 = vpop.f32.mrf.mxu0
    %v396 = vadd.f32 %v179, %v395
    %v397 = vpop.f32.mrf.mxu0
    %v398 = vpop.f32.mrf.mxu0
    %399 = vdwg.mxu0
    %v400 = vmax.f32 %v394, 0.0
    %v401 = vmax.f32 %v396, 0.0
    %v402 = vld [vmem:[%s5] sm:$0x3]
    %v404 = vlaneseq
    %v405 = vshrl.u32 %v404, 7
    %v406 = vsub.s32 0, %v405
    %v407 = vrot.slane %v402, %v406
    %v408 = vlaneseq
    %v409 = vshrl.u32 %v408, 7
    %v410 = vsub.s32 1, %v409
    %v411 = vrot.slane %v402, %v410
    %v414 = vmul.f32 %v400, %v407
    %v415 = vmul.f32 %v401, %v411
    %vm416 = vcmask 1041408
    %v417 = vsel %vm416, %v414, 0.0
    %v418 = vsel %vm416, %v415, 0.0
    %v419 = vadd.f32 %v417, %v418
    %420 = vadd.xlane.f32.xlu0 %v419
    %v421 = vpop.xlane.xlu0 %420
    %s422 = sld [smem:[#allocation3]]
    %v423 = vstv %s422
    %v424 = vadd.f32 %v421, %v423
    %v425 = vtanh.pop %v424
    %vm426 = vcmask 1024
    %427 = vst.msk [vmem:[%s7] sm:$0x3] %vm426, %v425
    // Predicated region
    $region42: #{tpu_custom_call.1} parent=1 // pred_check
      _
    $region43: #{tpu_custom_call.1} parent=1 // pred_check_branch
      %429 = sbr.rel (0) target = $region45
    $region44: #{tpu_custom_call.1} parent=1 // pred_region
      _
    $region45: #{tpu_custom_call.1} parent=1 // pred_fallthru
      _
    // Predicated region
    $region46: #{tpu_custom_call.1} parent=1 // pred_check
      _
    $region47: #{tpu_custom_call.1} parent=1 // pred_check_branch
      %431 = sbr.rel (0) target = $region49
    $region48: #{tpu_custom_call.1} parent=1 // pred_region
      _
    $region49: #{tpu_custom_call.1} parent=1 // pred_fallthru
      _
    %432 = vsyncpa [#allocation5], 1
    %433 = vsyncpa [#allocation9], 1
    %434 = vsyncpa [#allocation6], 1

</llo_original>
